<compile_context>
chip_gen: v5e
topology: v5e:2x2
jax: 0.10.0
libtpu: 0.0.40
codegen_flags: <defaults>
</compile_context>

<pallas_src>
import math
from functools import partial

import jax
import jax.numpy as jnp
from jax.experimental import pallas as pl
from jax.experimental.pallas import tpu as pltpu

LN_EPS = 1e-5
BN_EPS = 1e-5
LANE = 128
SUBLANE = 8


def _round_up(x, m):
    return ((x + m - 1) // m) * m


def _make_fused_embed_kernel(n_layers, real_cins, use_bf16_matmul,
                             gelu_tanh, bf16_elementwise):
    """Fused (BN-fold) -> [LayerNorm -> Linear -> GELU] * L kernel body.

    Positional ref layout:
      x_ref, bn_scale_ref, bn_shift_ref,
      [ln_g_l, ln_b_l, w_l, b_l] for l in range(n_layers),
      out_ref
    """
    inv_sqrt2 = 1.0 / math.sqrt(2.0)
    k_tanh = math.sqrt(2.0 / math.pi)

    def gelu(y):
        if gelu_tanh:
            # tanh-form GELU: transcendental goes to the EUP slot (VALU relief).
            return 0.5 * y * (1.0 + jnp.tanh(k_tanh * (y + 0.044715 * (y * y * y))))
        # Exact erf form (torch.nn.GELU default).
        return 0.5 * y * (1.0 + jax.lax.erf(y * inv_sqrt2))

    def kernel(x_ref, bn_s_ref, bn_b_ref, *refs):
        out_ref = refs[-1]
        layer_refs = refs[:-1]

        # Folded eval-mode BatchNorm (per-feature scale/shift) in f32.
        h = x_ref[...].astype(jnp.float32)
        h = h * bn_s_ref[...] + bn_b_ref[...]

        for l in range(n_layers):
            ln_g = layer_refs[4 * l][...].astype(jnp.float32)      # (1, cin)
            ln_b = layer_refs[4 * l + 1][...].astype(jnp.float32)  # (1, cin)
            w = layer_refs[4 * l + 2][...]                          # (cin, cout_p)
            b = layer_refs[4 * l + 3][...].astype(jnp.float32)      # (1, cout_p)

            c_real = real_cins[l]
            inv_c = 1.0 / c_real

            # LayerNorm statistics in f32.  For padded layers the pad columns
            # of h are exactly zero, so the plain sums give the real-column
            # statistics and var = E[x^2] - mu^2 needs no mask/select.  Pad
            # columns of xn are re-zeroed by the zero-padded gamma/beta.
            hf = h.astype(jnp.float32)
            mu = jnp.sum(hf, axis=-1, keepdims=True) * inv_c
            ex2 = jnp.sum(hf * hf, axis=-1, keepdims=True) * inv_c
            var = jnp.maximum(ex2 - mu * mu, 0.0)
            xn = (hf - mu) * jax.lax.rsqrt(var + LN_EPS)
            xn = xn * ln_g + ln_b

            # Linear on the MXU (optionally bf16 inputs, f32 accumulation).
            lhs = xn.astype(jnp.bfloat16) if use_bf16_matmul else xn
            y = jnp.dot(lhs, w, preferred_element_type=jnp.float32) + b

            # GELU(0) == 0 (both forms), so zero pad columns stay zero.
            if bf16_elementwise:
                # v6e/v7x packed-bf16 VPU/EUP path for the activation.
                # TODO(synk): extend bf16 to the LN affine while keeping the
                # statistics (sum / sum-sq / rsqrt) in f32.
                y = y.astype(jnp.bfloat16)
            h = gelu(y)

        out_ref[...] = h.astype(out_ref.dtype)

    return kernel


@partial(jax.jit,
         static_argnames=("tm", "use_bf16_matmul", "gelu_tanh",
                          "bf16_elementwise", "out_dtype", "vmem_limit_bytes"))
def embed_forward(x, params, *, tm=512, use_bf16_matmul=True, gelu_tanh=True,
                  bf16_elementwise=False, out_dtype=jnp.float32,
                  vmem_limit_bytes=None):
    """x: (N, C, P) float32 -> (P, N, dims[-1]) in out_dtype.

    tm: row-tile size (rounded to a sublane multiple, capped so the row grid
        has >= 2 steps).  512 is a safe default everywhere; on v6e (128 MiB
        VMEM) tm can be pushed to 1024-2048 (the VMEM limit is auto-raised),
        on v7x (64 MiB) keep tm <= ~1024 for 512-wide layers, on v5e keep
        tm <= 512 and bf16_elementwise=False.
    """
    N, C, P = x.shape
    layers = params["layers"]
    dims = [l["w"].shape[1] for l in layers]
    n_layers = len(dims)

    # ---- Fold eval-mode BatchNorm1d into per-channel scale/shift. ----------
    bn = params["bn"]
    bn_scale = bn["weight"] * jax.lax.rsqrt(bn["running_var"] + BN_EPS)
    bn_shift = bn["bias"] - bn["running_mean"] * bn_scale

    # ---- Row layout.  Input keeps its real width C (no 128-lane-padded HBM
    # copy of x); only hidden/output widths are lane-padded. -----------------
    M = P * N
    widths = [C] + list(dims)
    c_pads = [C] + [_round_up(c, LANE) for c in dims]

    tm = max(SUBLANE, _round_up(min(tm, M), SUBLANE))
    if M > SUBLANE:
        # Keep the row grid >= 2 so both v7x TensorCores get work.
        tm = min(tm, _round_up((M + 1) // 2, SUBLANE))
    M_pad = _round_up(M, tm)

    # TODO(synk): the (N,C,P)->(P,N,C) permute is left to XLA (one cheap pass
    # over the *unpadded* input); folding it into the kernel via an (N,C,tp)
    # BlockSpec + in-kernel XLU transpose would remove even this pass.
    h0 = jnp.transpose(x, (2, 0, 1)).reshape(M, C).astype(jnp.float32)
    if M_pad > M:
        h0 = jnp.pad(h0, ((0, M_pad - M), (0, 0)))

    def pad_row(v, cp):
        v = v.astype(jnp.float32)
        return jnp.pad(v, (0, cp - v.shape[0])).reshape(1, cp)

    bn_scale_p = pad_row(bn_scale, C)
    bn_shift_p = pad_row(bn_shift, C)

    w_dtype = jnp.bfloat16 if use_bf16_matmul else jnp.float32
    w_itemsize = 2 if use_bf16_matmul else 4
    # TODO(synk): resident params would ideally use pipeline_mode=pl.Buffered(1)
    # (constant index_map -> single buffer, halving their VMEM footprint); left
    # at the default pipelining for compatibility.
    resident = lambda shape: pl.BlockSpec(shape, lambda i: (0, 0))

    layer_args = []
    in_specs = [
        pl.BlockSpec((tm, C), lambda i: (i, 0)),  # x row tile, unpadded width
        resident((1, C)),                         # BN scale
        resident((1, C)),                         # BN shift
    ]
    resident_bytes = 2 * C * 4
    for l, layer in enumerate(layers):
        cin_r, cout_r = widths[l], widths[l + 1]
        cin_k = c_pads[l]          # width of h entering this layer (== C for l==0)
        cout_p = c_pads[l + 1]
        w = jnp.pad(layer["w"].astype(jnp.float32),
                    ((0, cin_k - cin_r), (0, cout_p - cout_r)))
        layer_args += [
            pad_row(layer["ln_g"], cin_k),
            pad_row(layer["ln_b"], cin_k),
            w.astype(w_dtype),
            pad_row(layer["b"], cout_p),
        ]
        in_specs += [
            resident((1, cin_k)),        # LN gamma (zero-padded)
            resident((1, cin_k)),        # LN beta  (zero-padded)
            resident((cin_k, cout_p)),   # W (in, out), zero-padded
            resident((1, cout_p)),       # bias, zero-padded
        ]
        resident_bytes += 2 * cin_k * 4 + cin_k * cout_p * w_itemsize + cout_p * 4

    kernel = _make_fused_embed_kernel(
        n_layers, real_cins=tuple(widths[:-1]),
        use_bf16_matmul=use_bf16_matmul, gelu_tanh=gelu_tanh,
        bf16_elementwise=bf16_elementwise)

    out_itemsize = jnp.dtype(out_dtype).itemsize

    # ---- VMEM budget (double-buffered streams + resident params + temps). --
    max_w = max(c_pads)
    stream_bytes = 2 * tm * C * 4 + 2 * tm * c_pads[-1] * out_itemsize
    temp_bytes = 6 * tm * max_w * 4
    if vmem_limit_bytes is None:
        est = 2 * resident_bytes + stream_bytes + temp_bytes
        vmem_limit_bytes = int(min(max(32 << 20, 2 * est), 64 << 20))

    # ---- Advisory cost estimate for XLA scheduling around the call. --------
    flops = 0
    transcendentals = 0
    for l in range(n_layers):
        flops += 2 * M_pad * c_pads[l] * c_pads[l + 1]   # matmul
        flops += 12 * M_pad * c_pads[l]                   # LN elementwise
        flops += 8 * M_pad * c_pads[l + 1]                # bias + GELU poly
        transcendentals += M_pad * c_pads[l + 1]          # one tanh/erf per elem
    bytes_accessed = (M_pad * C * 4 + M_pad * c_pads[-1] * out_itemsize
                      + resident_bytes)

    grid = (M_pad // tm,)
    out = pl.pallas_call(
        kernel,
        out_shape=jax.ShapeDtypeStruct((M_pad, c_pads[-1]), out_dtype),
        grid_spec=pltpu.PrefetchScalarGridSpec(
            num_scalar_prefetch=0,
            grid=grid,
            in_specs=in_specs,
            out_specs=pl.BlockSpec((tm, c_pads[-1]), lambda i: (i, 0)),
        ),
        compiler_params=pltpu.CompilerParams(
            dimension_semantics=("parallel",),
            vmem_limit_bytes=vmem_limit_bytes,
        ),
        cost_estimate=pl.CostEstimate(
            flops=int(flops),
            transcendentals=int(transcendentals),
            bytes_accessed=int(bytes_accessed),
        ),
    )(h0, bn_scale_p, bn_shift_p, *layer_args)

    # Slice off row/lane padding only when present; restore (P, N, dims[-1]).
    if M_pad > M:
        out = out[:M]
    if c_pads[-1] > dims[-1]:
        out = out[:, :dims[-1]]
    return out.reshape(P, N, dims[-1])


def embed_forward_reference(x, params):
    """Pure-JAX reference (matches torch eval-mode semantics; f32 matmuls)."""
    bn = params["bn"]
    scale = bn["weight"] / jnp.sqrt(bn["running_var"] + BN_EPS)
    shift = bn["bias"] - bn["running_mean"] * scale
    h = jnp.transpose(x, (2, 0, 1)) * scale + shift  # (P, N, C)
    for layer in params["layers"]:
        mu = jnp.mean(h, axis=-1, keepdims=True)
        var = jnp.mean((h - mu) ** 2, axis=-1, keepdims=True)
        h = (h - mu) / jnp.sqrt(var + LN_EPS)
        h = h * layer["ln_g"] + layer["ln_b"]
        h = jnp.dot(h, layer["w"], precision=jax.lax.Precision.HIGHEST) + layer["b"]
        h = 0.5 * h * (1.0 + jax.lax.erf(h / math.sqrt(2.0)))
    return h


def init_embed_params(key, input_dim, dims):
    """Deterministic synthetic parameters (shapes match the PyTorch module)."""
    params = {}
    k = key
    k, k1, k2, k3, k4 = jax.random.split(k, 5)
    params["bn"] = {
        "weight": 1.0 + 0.1 * jax.random.normal(k1, (input_dim,), jnp.float32),
        "bias": 0.1 * jax.random.normal(k2, (input_dim,), jnp.float32),
        "running_mean": 0.1 * jax.random.normal(k3, (input_dim,), jnp.float32),
        "running_var": 1.0 + 0.1 * jax.random.uniform(k4, (input_dim,), jnp.float32),
    }
    layer_list = []
    c_in = input_dim
    for d in dims:
        k, k1, k2, k3, k4 = jax.random.split(k, 5)
        bound = 1.0 / math.sqrt(c_in)
        layer_list.append({
            "ln_g": 1.0 + 0.05 * jax.random.normal(k1, (c_in,), jnp.float32),
            "ln_b": 0.05 * jax.random.normal(k2, (c_in,), jnp.float32),
            # stored as (in, out) == torch Linear weight.T
            "w": jax.random.uniform(k3, (c_in, d), jnp.float32, -bound, bound),
            "b": jax.random.uniform(k4, (d,), jnp.float32, -bound, bound),
        })
        c_in = d
    params["layers"] = layer_list
    return params


if __name__ == "__main__":
    # Small shapes: batch N=2, input_dim C=4, particles P=8, dims=(16, 32).
    key = jax.random.PRNGKey(0)
    kx, kp = jax.random.split(key)
    N, C, P = 2, 4, 8
    dims = (16, 32)

    x = jax.random.normal(kx, (N, C, P), jnp.float32)
    params = init_embed_params(kp, C, dims)

    ref = jax.block_until_ready(embed_forward_reference(x, params))

    # Bit-accurate mode: f32 matmuls + exact-erf GELU, tight tolerance.
    out_exact = jax.block_until_ready(
        embed_forward(x, params, use_bf16_matmul=False, gelu_tanh=False))
    assert out_exact.shape == (P, N, dims[-1]), out_exact.shape
    assert bool(jnp.all(jnp.isfinite(out_exact)))
    assert bool(jnp.allclose(out_exact, ref, rtol=3e-3, atol=3e-3)), \
        float(jnp.max(jnp.abs(out_exact - ref)))

    # Fast default mode: bf16 MXU inputs (f32 accumulation) + tanh GELU.
    out_fast = jax.block_until_ready(embed_forward(x, params))
    assert out_fast.shape == (P, N, dims[-1]), out_fast.shape
    assert bool(jnp.all(jnp.isfinite(out_fast)))
    assert bool(jnp.allclose(out_fast, ref, rtol=3e-2, atol=3e-2)), \
        float(jnp.max(jnp.abs(out_fast - ref)))

    print("KERNEL_OK")
</pallas_src>

<mosaic_0001>
module attributes {stable_mosaic.version = 11 : i64} {
  func.func @kernel(%arg0: i32, %arg1: memref<8x4xf32, #tpu.memory_space<vmem>>, %arg2: memref<1x4xf32, #tpu.memory_space<vmem>>, %arg3: memref<1x4xf32, #tpu.memory_space<vmem>>, %arg4: memref<1x4xf32, #tpu.memory_space<vmem>>, %arg5: memref<1x4xf32, #tpu.memory_space<vmem>>, %arg6: memref<4x128xf32, #tpu.memory_space<vmem>>, %arg7: memref<1x128xf32, #tpu.memory_space<vmem>>, %arg8: memref<1x128xf32, #tpu.memory_space<vmem>>, %arg9: memref<1x128xf32, #tpu.memory_space<vmem>>, %arg10: memref<128x128xf32, #tpu.memory_space<vmem>>, %arg11: memref<1x128xf32, #tpu.memory_space<vmem>>, %arg12: memref<8x128xf32, #tpu.memory_space<vmem>>) attributes {dimension_semantics = [#tpu.dimension_semantics<parallel>], iteration_bounds = array<i64: 2>, scalar_prefetch = 0 : i64, scratch_operands = 0 : i64, tpu.core_type = #tpu.core_type<tc>, window_params = [{transform_indices = @transform_0, window_bounds = array<i64: 8, 4>}, {pipeline_mode = #tpu.pipeline_mode<synchronous>, transform_indices = @transform_1, window_bounds = array<i64: 1, 4>}, {pipeline_mode = #tpu.pipeline_mode<synchronous>, transform_indices = @transform_2, window_bounds = array<i64: 1, 4>}, {pipeline_mode = #tpu.pipeline_mode<synchronous>, transform_indices = @transform_3, window_bounds = array<i64: 1, 4>}, {pipeline_mode = #tpu.pipeline_mode<synchronous>, transform_indices = @transform_4, window_bounds = array<i64: 1, 4>}, {pipeline_mode = #tpu.pipeline_mode<synchronous>, transform_indices = @transform_5, window_bounds = array<i64: 4, 128>}, {pipeline_mode = #tpu.pipeline_mode<synchronous>, transform_indices = @transform_6, window_bounds = array<i64: 1, 128>}, {pipeline_mode = #tpu.pipeline_mode<synchronous>, transform_indices = @transform_7, window_bounds = array<i64: 1, 128>}, {pipeline_mode = #tpu.pipeline_mode<synchronous>, transform_indices = @transform_8, window_bounds = array<i64: 1, 128>}, {pipeline_mode = #tpu.pipeline_mode<synchronous>, transform_indices = @transform_9, window_bounds = array<i64: 128, 128>}, {pipeline_mode = #tpu.pipeline_mode<synchronous>, transform_indices = @transform_10, window_bounds = array<i64: 1, 128>}, {transform_indices = @transform_11, window_bounds = array<i64: 8, 128>}]} {
    %c0 = arith.constant 0 : index
    %c0_0 = arith.constant 0 : index
    %0 = vector.load %arg1[%c0, %c0_0] : memref<8x4xf32, #tpu.memory_space<vmem>>, vector<8x4xf32>
    %c0_1 = arith.constant 0 : index
    %c0_2 = arith.constant 0 : index
    %1 = vector.load %arg2[%c0_1, %c0_2] : memref<1x4xf32, #tpu.memory_space<vmem>>, vector<1x4xf32>
    %2 = vector.broadcast %1 : vector<1x4xf32> to vector<8x4xf32>
    %3 = arith.mulf %0, %2 : vector<8x4xf32>
    %c0_3 = arith.constant 0 : index
    %c0_4 = arith.constant 0 : index
    %4 = vector.load %arg3[%c0_3, %c0_4] : memref<1x4xf32, #tpu.memory_space<vmem>>, vector<1x4xf32>
    %5 = vector.broadcast %4 : vector<1x4xf32> to vector<8x4xf32>
    %6 = arith.addf %3, %5 : vector<8x4xf32>
    %c0_5 = arith.constant 0 : index
    %c0_6 = arith.constant 0 : index
    %7 = vector.load %arg4[%c0_5, %c0_6] : memref<1x4xf32, #tpu.memory_space<vmem>>, vector<1x4xf32>
    %c0_7 = arith.constant 0 : index
    %c0_8 = arith.constant 0 : index
    %8 = vector.load %arg5[%c0_7, %c0_8] : memref<1x4xf32, #tpu.memory_space<vmem>>, vector<1x4xf32>
    %c0_9 = arith.constant 0 : index
    %c0_10 = arith.constant 0 : index
    %9 = vector.load %arg6[%c0_9, %c0_10] : memref<4x128xf32, #tpu.memory_space<vmem>>, vector<4x128xf32>
    %c0_11 = arith.constant 0 : index
    %c0_12 = arith.constant 0 : index
    %10 = vector.load %arg7[%c0_11, %c0_12] : memref<1x128xf32, #tpu.memory_space<vmem>>, vector<1x128xf32>
    %cst = arith.constant dense<0.000000e+00> : vector<8xf32>
    %11 = vector.multi_reduction <add>, %6, %cst [1] : vector<8x4xf32> to vector<8xf32>
    %12 = vector.shape_cast %11 : vector<8xf32> to vector<8x1xf32>
    %cst_13 = arith.constant 2.500000e-01 : f32
    %13 = vector.broadcast %cst_13 : f32 to vector<8x1xf32>
    %14 = arith.mulf %12, %13 : vector<8x1xf32>
    %15 = arith.mulf %6, %6 : vector<8x4xf32>
    %cst_14 = arith.constant dense<0.000000e+00> : vector<8xf32>
    %16 = vector.multi_reduction <add>, %15, %cst_14 [1] : vector<8x4xf32> to vector<8xf32>
    %17 = vector.shape_cast %16 : vector<8xf32> to vector<8x1xf32>
    %cst_15 = arith.constant 2.500000e-01 : f32
    %18 = vector.broadcast %cst_15 : f32 to vector<8x1xf32>
    %19 = arith.mulf %17, %18 : vector<8x1xf32>
    %20 = arith.mulf %14, %14 : vector<8x1xf32>
    %21 = arith.subf %19, %20 : vector<8x1xf32>
    %cst_16 = arith.constant 0.000000e+00 : f32
    %22 = vector.broadcast %cst_16 : f32 to vector<8x1xf32>
    %23 = arith.maximumf %21, %22 : vector<8x1xf32>
    %24 = vector.broadcast %14 : vector<8x1xf32> to vector<8x4xf32>
    %25 = arith.subf %6, %24 : vector<8x4xf32>
    %cst_17 = arith.constant 9.99999974E-6 : f32
    %26 = vector.broadcast %cst_17 : f32 to vector<8x1xf32>
    %27 = arith.addf %23, %26 : vector<8x1xf32>
    %28 = math.rsqrt %27 : vector<8x1xf32>
    %29 = vector.broadcast %28 : vector<8x1xf32> to vector<8x4xf32>
    %30 = arith.mulf %25, %29 : vector<8x4xf32>
    %31 = vector.broadcast %7 : vector<1x4xf32> to vector<8x4xf32>
    %32 = arith.mulf %30, %31 : vector<8x4xf32>
    %33 = vector.broadcast %8 : vector<1x4xf32> to vector<8x4xf32>
    %34 = arith.addf %32, %33 : vector<8x4xf32>
    %cst_18 = arith.constant dense<0.000000e+00> : vector<8x128xf32>
    %35 = tpu.matmul %34, %9, %cst_18 {dimension_numbers = #tpu.dot_dimension_numbers<[1], [0], [0], [1], [0, 0, 1, 1], [], []>} : vector<8x4xf32>, vector<4x128xf32>, vector<8x128xf32> -> vector<8x128xf32>
    %36 = vector.broadcast %10 : vector<1x128xf32> to vector<8x128xf32>
    %37 = arith.addf %35, %36 : vector<8x128xf32>
    %cst_19 = arith.constant 5.000000e-01 : f32
    %38 = vector.broadcast %cst_19 : f32 to vector<8x128xf32>
    %39 = arith.mulf %38, %37 : vector<8x128xf32>
    %cst_20 = arith.constant 0.707106769 : f32
    %40 = vector.broadcast %cst_20 : f32 to vector<8x128xf32>
    %41 = arith.mulf %37, %40 : vector<8x128xf32>
    %42 = math.erf %41 : vector<8x128xf32>
    %cst_21 = arith.constant 1.000000e+00 : f32
    %43 = vector.broadcast %cst_21 : f32 to vector<8x128xf32>
    %44 = arith.addf %43, %42 : vector<8x128xf32>
    %45 = arith.mulf %39, %44 : vector<8x128xf32>
    %c0_22 = arith.constant 0 : index
    %c0_23 = arith.constant 0 : index
    %46 = vector.load %arg8[%c0_22, %c0_23] : memref<1x128xf32, #tpu.memory_space<vmem>>, vector<1x128xf32>
    %c0_24 = arith.constant 0 : index
    %c0_25 = arith.constant 0 : index
    %47 = vector.load %arg9[%c0_24, %c0_25] : memref<1x128xf32, #tpu.memory_space<vmem>>, vector<1x128xf32>
    %c0_26 = arith.constant 0 : index
    %c0_27 = arith.constant 0 : index
    %48 = vector.load %arg10[%c0_26, %c0_27] : memref<128x128xf32, #tpu.memory_space<vmem>>, vector<128x128xf32>
    %c0_28 = arith.constant 0 : index
    %c0_29 = arith.constant 0 : index
    %49 = vector.load %arg11[%c0_28, %c0_29] : memref<1x128xf32, #tpu.memory_space<vmem>>, vector<1x128xf32>
    %cst_30 = arith.constant dense<0.000000e+00> : vector<8xf32>
    %50 = vector.multi_reduction <add>, %45, %cst_30 [1] : vector<8x128xf32> to vector<8xf32>
    %51 = vector.shape_cast %50 : vector<8xf32> to vector<8x1xf32>
    %cst_31 = arith.constant 6.250000e-02 : f32
    %52 = vector.broadcast %cst_31 : f32 to vector<8x1xf32>
    %53 = arith.mulf %51, %52 : vector<8x1xf32>
    %54 = arith.mulf %45, %45 : vector<8x128xf32>
    %cst_32 = arith.constant dense<0.000000e+00> : vector<8xf32>
    %55 = vector.multi_reduction <add>, %54, %cst_32 [1] : vector<8x128xf32> to vector<8xf32>
    %56 = vector.shape_cast %55 : vector<8xf32> to vector<8x1xf32>
    %cst_33 = arith.constant 6.250000e-02 : f32
    %57 = vector.broadcast %cst_33 : f32 to vector<8x1xf32>
    %58 = arith.mulf %56, %57 : vector<8x1xf32>
    %59 = arith.mulf %53, %53 : vector<8x1xf32>
    %60 = arith.subf %58, %59 : vector<8x1xf32>
    %cst_34 = arith.constant 0.000000e+00 : f32
    %61 = vector.broadcast %cst_34 : f32 to vector<8x1xf32>
    %62 = arith.maximumf %60, %61 : vector<8x1xf32>
    %63 = vector.broadcast %53 : vector<8x1xf32> to vector<8x128xf32>
    %64 = arith.subf %45, %63 : vector<8x128xf32>
    %cst_35 = arith.constant 9.99999974E-6 : f32
    %65 = vector.broadcast %cst_35 : f32 to vector<8x1xf32>
    %66 = arith.addf %62, %65 : vector<8x1xf32>
    %67 = math.rsqrt %66 : vector<8x1xf32>
    %68 = vector.broadcast %67 : vector<8x1xf32> to vector<8x128xf32>
    %69 = arith.mulf %64, %68 : vector<8x128xf32>
    %70 = vector.broadcast %46 : vector<1x128xf32> to vector<8x128xf32>
    %71 = arith.mulf %69, %70 : vector<8x128xf32>
    %72 = vector.broadcast %47 : vector<1x128xf32> to vector<8x128xf32>
    %73 = arith.addf %71, %72 : vector<8x128xf32>
    %cst_36 = arith.constant dense<0.000000e+00> : vector<8x128xf32>
    %74 = tpu.matmul %73, %48, %cst_36 {dimension_numbers = #tpu.dot_dimension_numbers<[1], [0], [0], [1], [0, 0, 1, 1], [], []>} : vector<8x128xf32>, vector<128x128xf32>, vector<8x128xf32> -> vector<8x128xf32>
    %75 = vector.broadcast %49 : vector<1x128xf32> to vector<8x128xf32>
    %76 = arith.addf %74, %75 : vector<8x128xf32>
    %cst_37 = arith.constant 5.000000e-01 : f32
    %77 = vector.broadcast %cst_37 : f32 to vector<8x128xf32>
    %78 = arith.mulf %77, %76 : vector<8x128xf32>
    %cst_38 = arith.constant 0.707106769 : f32
    %79 = vector.broadcast %cst_38 : f32 to vector<8x128xf32>
    %80 = arith.mulf %76, %79 : vector<8x128xf32>
    %81 = math.erf %80 : vector<8x128xf32>
    %cst_39 = arith.constant 1.000000e+00 : f32
    %82 = vector.broadcast %cst_39 : f32 to vector<8x128xf32>
    %83 = arith.addf %82, %81 : vector<8x128xf32>
    %84 = arith.mulf %78, %83 : vector<8x128xf32>
    %c0_40 = arith.constant 0 : index
    %c0_41 = arith.constant 0 : index
    %85 = vector.load %arg12[%c0_40, %c0_41] : memref<8x128xf32, #tpu.memory_space<vmem>>, vector<8x128xf32>
    tpu.vector_store %arg12[%c0_40, %c0_41], %84 {strides = array<i32>} : memref<8x128xf32, #tpu.memory_space<vmem>>, vector<8x128xf32>,
    return
  }
  func.func @transform_0(%arg0: i32) -> (i32, i32) {
    %c0_i32 = arith.constant 0 : i32
    %c0_i32_0 = arith.constant 0 : i32
    return %arg0, %c0_i32 : i32, i32
  }
  func.func @transform_1(%arg0: i32) -> (i32, i32) {
    %c0_i32 = arith.constant 0 : i32
    %c0_i32_0 = arith.constant 0 : i32
    %c0_i32_1 = arith.constant 0 : i32
    return %c0_i32, %c0_i32_0 : i32, i32
  }
  func.func @transform_2(%arg0: i32) -> (i32, i32) {
    %c0_i32 = arith.constant 0 : i32
    %c0_i32_0 = arith.constant 0 : i32
    %c0_i32_1 = arith.constant 0 : i32
    return %c0_i32, %c0_i32_0 : i32, i32
  }
  func.func @transform_3(%arg0: i32) -> (i32, i32) {
    %c0_i32 = arith.constant 0 : i32
    %c0_i32_0 = arith.constant 0 : i32
    %c0_i32_1 = arith.constant 0 : i32
    return %c0_i32, %c0_i32_0 : i32, i32
  }
  func.func @transform_4(%arg0: i32) -> (i32, i32) {
    %c0_i32 = arith.constant 0 : i32
    %c0_i32_0 = arith.constant 0 : i32
    %c0_i32_1 = arith.constant 0 : i32
    return %c0_i32, %c0_i32_0 : i32, i32
  }
  func.func @transform_5(%arg0: i32) -> (i32, i32) {
    %c0_i32 = arith.constant 0 : i32
    %c0_i32_0 = arith.constant 0 : i32
    %c0_i32_1 = arith.constant 0 : i32
    return %c0_i32, %c0_i32_0 : i32, i32
  }
  func.func @transform_6(%arg0: i32) -> (i32, i32) {
    %c0_i32 = arith.constant 0 : i32
    %c0_i32_0 = arith.constant 0 : i32
    %c0_i32_1 = arith.constant 0 : i32
    return %c0_i32, %c0_i32_0 : i32, i32
  }
  func.func @transform_7(%arg0: i32) -> (i32, i32) {
    %c0_i32 = arith.constant 0 : i32
    %c0_i32_0 = arith.constant 0 : i32
    %c0_i32_1 = arith.constant 0 : i32
    return %c0_i32, %c0_i32_0 : i32, i32
  }
  func.func @transform_8(%arg0: i32) -> (i32, i32) {
    %c0_i32 = arith.constant 0 : i32
    %c0_i32_0 = arith.constant 0 : i32
    %c0_i32_1 = arith.constant 0 : i32
    return %c0_i32, %c0_i32_0 : i32, i32
  }
  func.func @transform_9(%arg0: i32) -> (i32, i32) {
    %c0_i32 = arith.constant 0 : i32
    %c0_i32_0 = arith.constant 0 : i32
    %c0_i32_1 = arith.constant 0 : i32
    return %c0_i32, %c0_i32_0 : i32, i32
  }
  func.func @transform_10(%arg0: i32) -> (i32, i32) {
    %c0_i32 = arith.constant 0 : i32
    %c0_i32_0 = arith.constant 0 : i32
    %c0_i32_1 = arith.constant 0 : i32
    return %c0_i32, %c0_i32_0 : i32, i32
  }
  func.func @transform_11(%arg0: i32) -> (i32, i32) {
    %c0_i32 = arith.constant 0 : i32
    %c0_i32_0 = arith.constant 0 : i32
    return %arg0, %c0_i32 : i32, i32
  }
}

</mosaic_0001>

<llo_original>
// kernel: embed_forward.1
$region0: #{embed_forward.1}
  #allocation0 [shape = 'u32[]', space=smem, size = 0x4, offset = 0x4, fixed_abs, tag = 'smem constant byte address 0x4 - core index']
  #allocation1 [shape = 'u32[72,128]{1,0:T(1,128)}', space=vmem, size = 0x9000, scoped, tag = 'internal scratch']
  %s0 = inlined_call_operand.vmem [shape: f32[16,4], index: 0, kind: input, shape index: {}]
  %s1 = inlined_call_operand.vmem [shape: f32[1,4], index: 1, kind: input, shape index: {}]
  %s2 = inlined_call_operand.vmem [shape: f32[1,4], index: 2, kind: input, shape index: {}]
  %s3 = inlined_call_operand.vmem [shape: f32[1,4], index: 3, kind: input, shape index: {}]
  %s4 = inlined_call_operand.vmem [shape: f32[1,4], index: 4, kind: input, shape index: {}]
  %s5 = inlined_call_operand.vmem [shape: f32[4,128], index: 5, kind: input, shape index: {}]
  %s6 = inlined_call_operand.vmem [shape: f32[1,128], index: 6, kind: input, shape index: {}]
  %s7 = inlined_call_operand.vmem [shape: f32[1,128], index: 7, kind: input, shape index: {}]
  %s8 = inlined_call_operand.vmem [shape: f32[1,128], index: 8, kind: input, shape index: {}]
  %s9 = inlined_call_operand.vmem [shape: f32[128,128], index: 9, kind: input, shape index: {}]
  %s10 = inlined_call_operand.vmem [shape: f32[1,128], index: 10, kind: input, shape index: {}]
  %s11 = inlined_call_operand.hbm [shape: f32[16,128], index: 11, kind: output, shape index: {}]
  %s12 = sld [smem:[#allocation0]]
  $region77: #{embed_forward.1} parent=0
    _
  %s14 = ssub.s32 1, %s12
  %s15 = scalar_select 0, %s14, %s12
  $region1: #{embed_forward.1} parent=0
    #allocation2 [shape = 'u8[8192]{0}', space=vmem, size = 0x2000, scoped, tag = 'output window, operand 0']
    #allocation3 [shape = 's32[2]{0}', space=sflag, size = 0x8, scoped, tag = 'scoped memory for embed_forward.1']
    %16 = vsyncpa [#allocation3], 0
    %s17 = scalar_lea.sflag [#allocation3], 1
    %18 = vsyncpa %s17, 0
    loop: start=0, step=1, limit=4
    $region2: #{embed_forward.1} parent=1 // loop_pre_header
      _
    $region3: #{embed_forward.1} parent=1 // loop_header
      %s20 = sphi 0, %s24
      %p21 = scmp.ge.s32.totalorder %s20, 4
      %s30 = sphi 0, %s32
      %s33 = sphi 0, %s30
      %s34 = sphi 0, %s33
      %s50 = sphi 0, %s34
      %s54 = sphi 0, %s54
      %s56 = sphi 0, %s54
      %s57 = sphi 0, %s56
      %s71 = sphi 0, %s57
      %s75 = sphi 0, %s75
      %s77 = sphi 0, %s75
      %s78 = sphi 0, %s77
      %s92 = sphi 0, %s78
      %s96 = sphi 0, %s96
      %s98 = sphi 0, %s96
      %s99 = sphi 0, %s98
      %s113 = sphi 0, %s99
      %s117 = sphi 0, %s117
      %s119 = sphi 0, %s117
      %s120 = sphi 0, %s119
      %s134 = sphi 0, %s120
      %s138 = sphi 0, %s138
      %s140 = sphi 0, %s138
      %s141 = sphi 0, %s140
      %s155 = sphi 0, %s141
      %s159 = sphi 0, %s159
      %s161 = sphi 0, %s159
      %s162 = sphi 0, %s161
      %s176 = sphi 0, %s162
      %s180 = sphi 0, %s180
      %s182 = sphi 0, %s180
      %s183 = sphi 0, %s182
      %s197 = sphi 0, %s183
      %s201 = sphi 0, %s201
      %s203 = sphi 0, %s201
      %s204 = sphi 0, %s203
      %s218 = sphi 0, %s204
      %s222 = sphi 0, %s222
      %s224 = sphi 0, %s222
      %s225 = sphi 0, %s224
      %s239 = sphi 0, %s225
      %s243 = sphi 0, %s243
      %s245 = sphi 0, %s243
      %s246 = sphi 0, %s245
      %s260 = sphi 0, %s246
      %s266 = sphi 0, %s268
      %s269 = sphi 0, %s266
      %s270 = sphi 0, %s269
      %s286 = sphi 0, %s270
    $region4: #{embed_forward.1} parent=1 // loop_header_branch
      %23 = sbr.rel (%p21) target = $region8
    $region5: #{embed_forward.1} parent=1 // loop_body
      %s25 = ssub.s32 %s20, 1
      %s26 = ssub.s32 %s20, 2
      %s27 = sadd.s32 %s20, 1
      %s28 = ssub.s32 %s20, %s27
      %p29 = scmp.eq.s32.totalorder %s28, 0
      %s31 = sadd.s32 %s30, 1
      %s32 = scalar_select %p29, %s30, %s31
      %p35 = pneg %p29
      %p36 = scmp.eq.s32.totalorder %s20, 1
      %p37 = por %p35, %p36
      %p38 = scmp.ne.s32.totalorder %s30, %s33
      %p39 = scmp.eq.s32.totalorder %s20, 0
      %p40 = por %p38, %p39
      %p41 = scmp.ne.s32.totalorder %s30, %s33
      %p42 = scmp.eq.s32.totalorder %s25, 1
      %p43 = por %p41, %p42
      %p44 = scmp.ne.s32.totalorder %s33, %s34
      %p45 = scmp.eq.s32.totalorder %s25, 0
      %p46 = por %p44, %p45
      %p47 = scmp.ne.s32.totalorder %s33, %s34
      %p48 = scmp.eq.s32.totalorder %s26, 1
      %p49 = por %p47, %p48
      %p51 = scmp.ne.s32.totalorder %s34, %s50
      %p52 = scmp.eq.s32.totalorder %s26, 0
      %p53 = por %p51, %p52
      %s55 = sadd.s32 %s54, 1
      %p58 = scmp.eq.s32.totalorder %s20, 1
      %p59 = scmp.ne.s32.totalorder %s54, %s56
      %p60 = scmp.eq.s32.totalorder %s20, 0
      %p61 = por %p59, %p60
      %p62 = scmp.ne.s32.totalorder %s54, %s56
      %p63 = scmp.eq.s32.totalorder %s25, 1
      %p64 = por %p62, %p63
      %p65 = scmp.ne.s32.totalorder %s56, %s57
      %p66 = scmp.eq.s32.totalorder %s25, 0
      %p67 = por %p65, %p66
      %p68 = scmp.ne.s32.totalorder %s56, %s57
      %p69 = scmp.eq.s32.totalorder %s26, 1
      %p70 = por %p68, %p69
      %p72 = scmp.ne.s32.totalorder %s57, %s71
      %p73 = scmp.eq.s32.totalorder %s26, 0
      %p74 = por %p72, %p73
      %s76 = sadd.s32 %s75, 1
      %p79 = scmp.eq.s32.totalorder %s20, 1
      %p80 = scmp.ne.s32.totalorder %s75, %s77
      %p81 = scmp.eq.s32.totalorder %s20, 0
      %p82 = por %p80, %p81
      %p83 = scmp.ne.s32.totalorder %s75, %s77
      %p84 = scmp.eq.s32.totalorder %s25, 1
      %p85 = por %p83, %p84
      %p86 = scmp.ne.s32.totalorder %s77, %s78
      %p87 = scmp.eq.s32.totalorder %s25, 0
      %p88 = por %p86, %p87
      %p89 = scmp.ne.s32.totalorder %s77, %s78
      %p90 = scmp.eq.s32.totalorder %s26, 1
      %p91 = por %p89, %p90
      %p93 = scmp.ne.s32.totalorder %s78, %s92
      %p94 = scmp.eq.s32.totalorder %s26, 0
      %p95 = por %p93, %p94
      %s97 = sadd.s32 %s96, 1
      %p100 = scmp.eq.s32.totalorder %s20, 1
      %p101 = scmp.ne.s32.totalorder %s96, %s98
      %p102 = scmp.eq.s32.totalorder %s20, 0
      %p103 = por %p101, %p102
      %p104 = scmp.ne.s32.totalorder %s96, %s98
      %p105 = scmp.eq.s32.totalorder %s25, 1
      %p106 = por %p104, %p105
      %p107 = scmp.ne.s32.totalorder %s98, %s99
      %p108 = scmp.eq.s32.totalorder %s25, 0
      %p109 = por %p107, %p108
      %p110 = scmp.ne.s32.totalorder %s98, %s99
      %p111 = scmp.eq.s32.totalorder %s26, 1
      %p112 = por %p110, %p111
      %p114 = scmp.ne.s32.totalorder %s99, %s113
      %p115 = scmp.eq.s32.totalorder %s26, 0
      %p116 = por %p114, %p115
      %s118 = sadd.s32 %s117, 1
      %p121 = scmp.eq.s32.totalorder %s20, 1
      %p122 = scmp.ne.s32.totalorder %s117, %s119
      %p123 = scmp.eq.s32.totalorder %s20, 0
      %p124 = por %p122, %p123
      %p125 = scmp.ne.s32.totalorder %s117, %s119
      %p126 = scmp.eq.s32.totalorder %s25, 1
      %p127 = por %p125, %p126
      %p128 = scmp.ne.s32.totalorder %s119, %s120
      %p129 = scmp.eq.s32.totalorder %s25, 0
      %p130 = por %p128, %p129
      %p131 = scmp.ne.s32.totalorder %s119, %s120
      %p132 = scmp.eq.s32.totalorder %s26, 1
      %p133 = por %p131, %p132
      %p135 = scmp.ne.s32.totalorder %s120, %s134
      %p136 = scmp.eq.s32.totalorder %s26, 0
      %p137 = por %p135, %p136
      %s139 = sadd.s32 %s138, 1
      %p142 = scmp.eq.s32.totalorder %s20, 1
      %p143 = scmp.ne.s32.totalorder %s138, %s140
      %p144 = scmp.eq.s32.totalorder %s20, 0
      %p145 = por %p143, %p144
      %p146 = scmp.ne.s32.totalorder %s138, %s140
      %p147 = scmp.eq.s32.totalorder %s25, 1
      %p148 = por %p146, %p147
      %p149 = scmp.ne.s32.totalorder %s140, %s141
      %p150 = scmp.eq.s32.totalorder %s25, 0
      %p151 = por %p149, %p150
      %p152 = scmp.ne.s32.totalorder %s140, %s141
      %p153 = scmp.eq.s32.totalorder %s26, 1
      %p154 = por %p152, %p153
      %p156 = scmp.ne.s32.totalorder %s141, %s155
      %p157 = scmp.eq.s32.totalorder %s26, 0
      %p158 = por %p156, %p157
      %s160 = sadd.s32 %s159, 1
      %p163 = scmp.eq.s32.totalorder %s20, 1
      %p164 = scmp.ne.s32.totalorder %s159, %s161
      %p165 = scmp.eq.s32.totalorder %s20, 0
      %p166 = por %p164, %p165
      %p167 = scmp.ne.s32.totalorder %s159, %s161
      %p168 = scmp.eq.s32.totalorder %s25, 1
      %p169 = por %p167, %p168
      %p170 = scmp.ne.s32.totalorder %s161, %s162
      %p171 = scmp.eq.s32.totalorder %s25, 0
      %p172 = por %p170, %p171
      %p173 = scmp.ne.s32.totalorder %s161, %s162
      %p174 = scmp.eq.s32.totalorder %s26, 1
      %p175 = por %p173, %p174
      %p177 = scmp.ne.s32.totalorder %s162, %s176
      %p178 = scmp.eq.s32.totalorder %s26, 0
      %p179 = por %p177, %p178
      %s181 = sadd.s32 %s180, 1
      %p184 = scmp.eq.s32.totalorder %s20, 1
      %p185 = scmp.ne.s32.totalorder %s180, %s182
      %p186 = scmp.eq.s32.totalorder %s20, 0
      %p187 = por %p185, %p186
      %p188 = scmp.ne.s32.totalorder %s180, %s182
      %p189 = scmp.eq.s32.totalorder %s25, 1
      %p190 = por %p188, %p189
      %p191 = scmp.ne.s32.totalorder %s182, %s183
      %p192 = scmp.eq.s32.totalorder %s25, 0
      %p193 = por %p191, %p192
      %p194 = scmp.ne.s32.totalorder %s182, %s183
      %p195 = scmp.eq.s32.totalorder %s26, 1
      %p196 = por %p194, %p195
      %p198 = scmp.ne.s32.totalorder %s183, %s197
      %p199 = scmp.eq.s32.totalorder %s26, 0
      %p200 = por %p198, %p199
      %s202 = sadd.s32 %s201, 1
      %p205 = scmp.eq.s32.totalorder %s20, 1
      %p206 = scmp.ne.s32.totalorder %s201, %s203
      %p207 = scmp.eq.s32.totalorder %s20, 0
      %p208 = por %p206, %p207
      %p209 = scmp.ne.s32.totalorder %s201, %s203
      %p210 = scmp.eq.s32.totalorder %s25, 1
      %p211 = por %p209, %p210
      %p212 = scmp.ne.s32.totalorder %s203, %s204
      %p213 = scmp.eq.s32.totalorder %s25, 0
      %p214 = por %p212, %p213
      %p215 = scmp.ne.s32.totalorder %s203, %s204
      %p216 = scmp.eq.s32.totalorder %s26, 1
      %p217 = por %p215, %p216
      %p219 = scmp.ne.s32.totalorder %s204, %s218
      %p220 = scmp.eq.s32.totalorder %s26, 0
      %p221 = por %p219, %p220
      %s223 = sadd.s32 %s222, 1
      %p226 = scmp.eq.s32.totalorder %s20, 1
      %p227 = scmp.ne.s32.totalorder %s222, %s224
      %p228 = scmp.eq.s32.totalorder %s20, 0
      %p229 = por %p227, %p228
      %p230 = scmp.ne.s32.totalorder %s222, %s224
      %p231 = scmp.eq.s32.totalorder %s25, 1
      %p232 = por %p230, %p231
      %p233 = scmp.ne.s32.totalorder %s224, %s225
      %p234 = scmp.eq.s32.totalorder %s25, 0
      %p235 = por %p233, %p234
      %p236 = scmp.ne.s32.totalorder %s224, %s225
      %p237 = scmp.eq.s32.totalorder %s26, 1
      %p238 = por %p236, %p237
      %p240 = scmp.ne.s32.totalorder %s225, %s239
      %p241 = scmp.eq.s32.totalorder %s26, 0
      %p242 = por %p240, %p241
      %s244 = sadd.s32 %s243, 1
      %p247 = scmp.eq.s32.totalorder %s20, 1
      %p248 = scmp.ne.s32.totalorder %s243, %s245
      %p249 = scmp.eq.s32.totalorder %s20, 0
      %p250 = por %p248, %p249
      %p251 = scmp.ne.s32.totalorder %s243, %s245
      %p252 = scmp.eq.s32.totalorder %s25, 1
      %p253 = por %p251, %p252
      %p254 = scmp.ne.s32.totalorder %s245, %s246
      %p255 = scmp.eq.s32.totalorder %s25, 0
      %p256 = por %p254, %p255
      %p257 = scmp.ne.s32.totalorder %s245, %s246
      %p258 = scmp.eq.s32.totalorder %s26, 1
      %p259 = por %p257, %p258
      %p261 = scmp.ne.s32.totalorder %s246, %s260
      %p262 = scmp.eq.s32.totalorder %s26, 0
      %p263 = por %p261, %p262
      %s264 = ssub.s32 %s20, %s27
      %p265 = scmp.eq.s32.totalorder %s264, 0
      %s267 = sadd.s32 %s266, 1
      %s268 = scalar_select %p265, %s266, %s267
      %p271 = pneg %p265
      %p272 = scmp.eq.s32.totalorder %s20, 1
      %p273 = por %p271, %p272
      %p274 = scmp.ne.s32.totalorder %s266, %s269
      %p275 = scmp.eq.s32.totalorder %s20, 0
      %p276 = por %p274, %p275
      %p277 = scmp.ne.s32.totalorder %s266, %s269
      %p278 = scmp.eq.s32.totalorder %s25, 1
      %p279 = por %p277, %p278
      %p280 = scmp.ne.s32.totalorder %s269, %s270
      %p281 = scmp.eq.s32.totalorder %s25, 0
      %p282 = por %p280, %p281
      %p283 = scmp.ne.s32.totalorder %s269, %s270
      %p284 = scmp.eq.s32.totalorder %s26, 1
      %p285 = por %p283, %p284
      %p287 = scmp.ne.s32.totalorder %s270, %s286
      %p288 = scmp.eq.s32.totalorder %s26, 0
      %p289 = por %p287, %p288
      %p290 = scmp.le.s32.totalorder 1, %s20
      %p291 = scmp.lt.s32.totalorder %s20, 3
      %p292 = pnand %p290, %p291
      %p293 = pneg %p292
      // Predicated region
      $region9: #{embed_forward.1} parent=5 // pred_check
        _
      $region10: #{embed_forward.1} parent=5 // pred_check_branch
        %295 = sbr.rel (%p292) target = $region12
      $region11: #{embed_forward.1} parent=5 // pred_region
        %s296 = ssub.s32 %s20, 1
        // Predicated region
        $region13: #{embed_forward.1} parent=11 // pred_check
          %p297 = pneg %p67
        $region14: #{embed_forward.1} parent=11 // pred_check_branch
          %299 = sbr.rel (%p297) target = $region16
        $region15: #{embed_forward.1} parent=11 // pred_region
          _
        $region16: #{embed_forward.1} parent=11 // pred_fallthru
          _
        // Predicated region
        $region17: #{embed_forward.1} parent=11 // pred_check
          %p300 = pneg %p88
        $region18: #{embed_forward.1} parent=11 // pred_check_branch
          %302 = sbr.rel (%p300) target = $region20
        $region19: #{embed_forward.1} parent=11 // pred_region
          _
        $region20: #{embed_forward.1} parent=11 // pred_fallthru
          _
        // Predicated region
        $region21: #{embed_forward.1} parent=11 // pred_check
          %p303 = pneg %p109
        $region22: #{embed_forward.1} parent=11 // pred_check_branch
          %305 = sbr.rel (%p303) target = $region24
        $region23: #{embed_forward.1} parent=11 // pred_region
          _
        $region24: #{embed_forward.1} parent=11 // pred_fallthru
          _
        // Predicated region
        $region25: #{embed_forward.1} parent=11 // pred_check
          %p306 = pneg %p130
        $region26: #{embed_forward.1} parent=11 // pred_check_branch
          %308 = sbr.rel (%p306) target = $region28
        $region27: #{embed_forward.1} parent=11 // pred_region
          _
        $region28: #{embed_forward.1} parent=11 // pred_fallthru
          _
        // Predicated region
        $region29: #{embed_forward.1} parent=11 // pred_check
          %p309 = pneg %p151
        $region30: #{embed_forward.1} parent=11 // pred_check_branch
          %311 = sbr.rel (%p309) target = $region32
        $region31: #{embed_forward.1} parent=11 // pred_region
          _
        $region32: #{embed_forward.1} parent=11 // pred_fallthru
          _
        // Predicated region
        $region33: #{embed_forward.1} parent=11 // pred_check
          %p312 = pneg %p172
        $region34: #{embed_forward.1} parent=11 // pred_check_branch
          %314 = sbr.rel (%p312) target = $region36
        $region35: #{embed_forward.1} parent=11 // pred_region
          _
        $region36: #{embed_forward.1} parent=11 // pred_fallthru
          _
        // Predicated region
        $region37: #{embed_forward.1} parent=11 // pred_check
          %p315 = pneg %p193
        $region38: #{embed_forward.1} parent=11 // pred_check_branch
          %317 = sbr.rel (%p315) target = $region40
        $region39: #{embed_forward.1} parent=11 // pred_region
          _
        $region40: #{embed_forward.1} parent=11 // pred_fallthru
          _
        // Predicated region
        $region41: #{embed_forward.1} parent=11 // pred_check
          %p318 = pneg %p214
        $region42: #{embed_forward.1} parent=11 // pred_check_branch
          %320 = sbr.rel (%p318) target = $region44
        $region43: #{embed_forward.1} parent=11 // pred_region
          _
        $region44: #{embed_forward.1} parent=11 // pred_fallthru
          _
        // Predicated region
        $region45: #{embed_forward.1} parent=11 // pred_check
          %p321 = pneg %p235
        $region46: #{embed_forward.1} parent=11 // pred_check_branch
          %323 = sbr.rel (%p321) target = $region48
        $region47: #{embed_forward.1} parent=11 // pred_region
          _
        $region48: #{embed_forward.1} parent=11 // pred_fallthru
          _
        // Predicated region
        $region49: #{embed_forward.1} parent=11 // pred_check
          %p324 = pneg %p256
        $region50: #{embed_forward.1} parent=11 // pred_check_branch
          %326 = sbr.rel (%p324) target = $region52
        $region51: #{embed_forward.1} parent=11 // pred_region
          _
        $region52: #{embed_forward.1} parent=11 // pred_fallthru
          _
      $region12: #{embed_forward.1} parent=5 // pred_fallthru
        _
      %p327 = scmp.lt.s32.totalorder %s20, 2
      // Predicated region
      $region53: #{embed_forward.1} parent=5 // pred_check
        %p328 = pneg %p327
      $region54: #{embed_forward.1} parent=5 // pred_check_branch
        %330 = sbr.rel (%p328) target = $region56
      $region55: #{embed_forward.1} parent=5 // pred_region
        // Predicated region
        $region57: #{embed_forward.1} parent=55 // pred_check
          %p331 = pneg %p40
        $region58: #{embed_forward.1} parent=55 // pred_check_branch
          %333 = sbr.rel (%p331) target = $region60
        $region59: #{embed_forward.1} parent=55 // pred_region
          %p334 = scmp.lt.s32.totalorder %s20, 1
          %s335 = scalar_select %p334, %s20, 1
          %s336 = smul.addr %s335, 8
          %s337 = scalar_lea.vmem %s0, %s336
        $region60: #{embed_forward.1} parent=55 // pred_fallthru
          _
      $region56: #{embed_forward.1} parent=5 // pred_fallthru
        _
      %p338 = scmp.le.s32.totalorder 1, %s20
      %p339 = scmp.lt.s32.totalorder %s20, 3
      %p340 = pnand %p338, %p339
      %p341 = pneg %p340
      // Predicated region
      $region61: #{embed_forward.1} parent=5 // pred_check
        _
      $region62: #{embed_forward.1} parent=5 // pred_check_branch
        %343 = sbr.rel (%p340) target = $region64
      $region63: #{embed_forward.1} parent=5 // pred_region
        %s344 = ssub.s32 %s20, 1
        %p345 = scmp.lt.s32.totalorder %s25, 1
        %s346 = scalar_select %p345, %s25, 1
        %s347 = smul.addr %s346, 8
        %s348 = scalar_lea.vmem %s0, %s347
        %p349 = pneg %p46
        %p350 = pneg %p43
        %p351 = pneg %p67
        %p352 = pneg %p64
        %p353 = pneg %p88
        %p354 = pneg %p85
        %p355 = pneg %p109
        %p356 = pneg %p106
        %p357 = pneg %p130
        %p358 = pneg %p127
        %p359 = pneg %p151
        %p360 = pneg %p148
        %p361 = pneg %p172
        %p362 = pneg %p169
        %p363 = pneg %p193
        %p364 = pneg %p190
        %p365 = pneg %p214
        %p366 = pneg %p211
        %p367 = pneg %p235
        %p368 = pneg %p232
        %p369 = pneg %p256
        %p370 = pneg %p253
        %p371 = pneg %p282
        %p372 = pneg %p279
        %s373 = sand.u32 %s269, 1
        %s374 = scalar_lea.sflag [#allocation3], %s373
        %s375 = sand.u32 %s269, 1
        %s376 = smul.addr %s375, 8
        %s377 = scalar_lea.vmem [#allocation2], %s376
        %p378 = scmp.lt.s32.totalorder %s25, 1
        %s379 = scalar_select %p378, %s25, 1
        %s380 = smul.addr %s379, 8
        %s381 = scalar_lea.vmem %s0, %s380
        %v382 = vld [vmem:[%s381] sm:$0xff]
        %v383 = vld [vmem:[%s1] sm:$0x1]
        %v385 = vperm.slane %v383, 0
        %v387 = vmul.f32 %v382, %v385
        %v388 = vld [vmem:[%s2] sm:$0x1]
        %v390 = vperm.slane %v388, 0
        %v392 = vadd.f32 %v387, %v390
        %v393 = vld [vmem:[%s3] sm:$0x1]
        %v394 = vld [vmem:[%s4] sm:$0x1]
        %v395 = vld [vmem:[%s5] sm:$0xf]
        %v396 = vld [vmem:[%s6] sm:$0x1]
        %vm397 = vcmask 31744
        %v398 = vsel %vm397, %v392, 0.0
        %399 = vadd.xlane.f32.xlu0 %v398
        %v400 = vpop.xlane.xlu0 %399
        %v401 = vmul.f32 %v400, 0.25
        %v402 = vmul.f32 %v392, %v392
        %v403 = vsel %vm397, %v402, 0.0
        %404 = vadd.xlane.f32.xlu0 %v403
        %v405 = vpop.xlane.xlu0 %404
        %v406 = vmul.f32 %v405, 0.25
        %v407 = vmul.f32 %v401, %v401
        %v408 = vsub.f32 %v406, %v407
        %v409 = vmax.f32 %v408, 0.0
        %v410 = vsub.f32 %v392, %v401
        %v411 = vadd.f32 %v409, 1e-05
        %v412 = vrsqrt.pop %v411
        %v413 = vmul.f32 %v412, %v411
        %v414 = vmul.f32 %v413, %v412
        %v415 = vmul.f32 0.5, %v414
        %v416 = vsub.f32 1.5, %v415
        %v417 = vmul.f32 %v412, %v416
        %vm418 = vweird.f32 %v411
        %vm419 = vweird.f32 %v412
        %vm420 = vmor %vm418, %vm419
        %v421 = vsel %vm420, %v412, %v417
        %v422 = vmul.f32 %v410, %v421
        %v424 = vperm.slane %v393, 0
        %v426 = vmul.f32 %v422, %v424
        %v428 = vperm.slane %v394, 0
        %v430 = vadd.f32 %v426, %v428
        %v432 = vperm.slane %v396, 0
        %v435 = vsel %vm397, %v430, 0
        %vm437 = vcmask 1043456
        %v439 = vsel %vm437, %v395, 0
        %441 = vmatpush.msra.mxu0 0.0
        %442 = vmatpush.msra.mxu0 0.0
        %443 = vmatpush.msra.mxu0 0.0
        %444 = vmatpush.msra.mxu0 0.0
        %445 = vmatpush.msra.mxu0 0.0
        %446 = vmatpush.msra.mxu0 0.0
        %447 = vmatpush.msra.mxu0 0.0
        %448 = vmatpush.msra.mxu0 0.0
        %449 = vmatpush.msra.mxu0 0.0
        %450 = vmatpush.msra.mxu0 0.0
        %451 = vmatpush.msra.mxu0 0.0
        %452 = vmatpush.msra.mxu0 0.0
        %453 = vmatpush.msra.mxu0 0.0
        %454 = vmatpush.msra.mxu0 0.0
        %455 = vmatpush.msra.mxu0 0.0
        %456 = vmatpush.msra.mxu0 %v439
        %457 = vmatmul.f32.gmra.mxu0 %v435
        %v458 = vpop.f32.mrf.mxu0
        %v459 = vadd.f32 %v432, %v458
        %460 = vdwg.mxu0
        %v461 = vmul.f32 %v459, 0.5
        %v462 = vmul.f32 %v459, 0.70710677
        %v463 = vmul.f32 %v462, %v462
        %v464 = vmin.f32 16.0, %v463
        %v465 = vmul.f32 %v464, 2.1237322e-06
        %v466 = vadd.f32 %v465, 0.00028619796
        %v467 = vmul.f32 %v464, %v466
        %v468 = vadd.f32 %v467, 0.0036580483
        %v469 = vmul.f32 %v464, %v468
        %v470 = vadd.f32 %v469, 0.05243302
        %v471 = vmul.f32 %v464, %v470
        %v472 = vadd.f32 %v471, 0.18741608
        %v473 = vmul.f32 %v464, %v472
        %v474 = vadd.f32 %v473, 1.1283791
        %v475 = vmul.f32 %v462, %v474
        %v476 = vmul.f32 %v464, 3.8918573e-05
        %v477 = vadd.f32 %v476, 0.001143296
        %v478 = vmul.f32 %v464, %v477
        %v479 = vadd.f32 %v478, 0.014752088
        %v480 = vmul.f32 %v464, %v479
        %v481 = vadd.f32 %v480, 0.112945676
        %v482 = vmul.f32 %v464, %v481
        %v483 = vadd.f32 %v482, 0.4994258
        %v484 = vmul.f32 %v464, %v483
        %v485 = vadd.f32 %v484, 1.0
        %v486 = vrcp.pop %v485
        %v487 = vmul.f32 %v485, %v486
        %v488 = vsub.f32 1.0, %v487
        %v489 = vmul.f32 %v486, %v488
        %v490 = vadd.f32 %v486, %v489
        %vm491 = vweird.f32 %v485
        %vm492 = vweird.f32 %v486
        %vm493 = vmor %vm491, %vm492
        %v494 = vsel %vm493, %v486, %v490
        %v495 = vand.u32 2147483647, %v485
        %vm496 = vcmp.eq.f32.partialorder %v495, 8.507059e+37
        %v497 = vand.u32 %v485, 2147483648
        %v498 = vor.u32 1.1754944e-38, %v497
        %v499 = vsel %vm496, %v498, %v494
        %v500 = vmul.f32 %v475, %v499
        %v501 = vmin.f32 %v500, 1.0
        %v502 = vmax.f32 %v501, -1.0
        %v503 = vadd.f32 %v502, 1.0
        %v504 = vmul.f32 %v461, %v503
        %v505 = vld [vmem:[%s7] sm:$0x1]
        %v506 = vld [vmem:[%s8] sm:$0x1]
        %v507 = vld [vmem:[%s9] sm:$0xff]
        %v508 = vld [vmem:[%s9 + $0x8] sm:$0xff]
        %v509 = vld [vmem:[%s9 + $0x10] sm:$0xff]
        %v510 = vld [vmem:[%s9 + $0x18] sm:$0xff]
        %v511 = vld [vmem:[%s9 + $0x20] sm:$0xff]
        %v512 = vld [vmem:[%s9 + $0x28] sm:$0xff]
        %v513 = vld [vmem:[%s9 + $0x30] sm:$0xff]
        %v514 = vld [vmem:[%s9 + $0x38] sm:$0xff]
        %v515 = vld [vmem:[%s9 + $0x40] sm:$0xff]
        %v516 = vld [vmem:[%s9 + $0x48] sm:$0xff]
        %v517 = vld [vmem:[%s9 + $0x50] sm:$0xff]
        %v518 = vld [vmem:[%s9 + $0x58] sm:$0xff]
        %v519 = vld [vmem:[%s9 + $0x60] sm:$0xff]
        %v520 = vld [vmem:[%s9 + $0x68] sm:$0xff]
        %v521 = vld [vmem:[%s9 + $0x70] sm:$0xff]
        %v522 = vld [vmem:[%s9 + $0x78] sm:$0xff]
        %v523 = vld [vmem:[%s10] sm:$0x1]
        %524 = vadd.xlane.f32.xlu0 %v504
        %v525 = vpop.xlane.xlu0 %524
        %v526 = vmul.f32 %v525, 0.0625
        %v527 = vmul.f32 %v504, %v504
        %528 = vadd.xlane.f32.xlu0 %v527
        %v529 = vpop.xlane.xlu0 %528
        %v530 = vmul.f32 %v529, 0.0625
        %v531 = vmul.f32 %v526, %v526
        %v532 = vsub.f32 %v530, %v531
        %v533 = vmax.f32 %v532, 0.0
        %v534 = vsub.f32 %v504, %v526
        %v535 = vadd.f32 %v533, 1e-05
        %v536 = vrsqrt.pop %v535
        %v537 = vmul.f32 %v536, %v535
        %v538 = vmul.f32 %v537, %v536
        %v539 = vmul.f32 0.5, %v538
        %v540 = vsub.f32 1.5, %v539
        %v541 = vmul.f32 %v536, %v540
        %vm542 = vweird.f32 %v535
        %vm543 = vweird.f32 %v536
        %vm544 = vmor %vm542, %vm543
        %v545 = vsel %vm544, %v536, %v541
        %v546 = vmul.f32 %v534, %v545
        %v548 = vperm.slane %v505, 0
        %v550 = vmul.f32 %v546, %v548
        %v552 = vperm.slane %v506, 0
        %v554 = vadd.f32 %v550, %v552
        %v556 = vperm.slane %v523, 0
        %558 = vmatpush.msra.mxu0 %v522
        %559 = vmatpush.msra.mxu0 %v521
        %560 = vmatpush.msra.mxu0 %v520
        %561 = vmatpush.msra.mxu0 %v519
        %562 = vmatpush.msra.mxu0 %v518
        %563 = vmatpush.msra.mxu0 %v517
        %564 = vmatpush.msra.mxu0 %v516
        %565 = vmatpush.msra.mxu0 %v515
        %566 = vmatpush.msra.mxu0 %v514
        %567 = vmatpush.msra.mxu0 %v513
        %568 = vmatpush.msra.mxu0 %v512
        %569 = vmatpush.msra.mxu0 %v511
        %570 = vmatpush.msra.mxu0 %v510
        %571 = vmatpush.msra.mxu0 %v509
        %572 = vmatpush.msra.mxu0 %v508
        %573 = vmatpush.msra.mxu0 %v507
        %574 = vmatmul.f32.gmra.mxu0 %v554
        %v575 = vpop.f32.mrf.mxu0
        %v576 = vadd.f32 %v556, %v575
        %577 = vdwg.mxu0
        %v578 = vmul.f32 %v576, 0.5
        %v579 = vmul.f32 %v576, 0.70710677
        %v580 = vmul.f32 %v579, %v579
        %v581 = vmin.f32 16.0, %v580
        %v582 = vmul.f32 %v581, 2.1237322e-06
        %v583 = vadd.f32 %v582, 0.00028619796
        %v584 = vmul.f32 %v581, %v583
        %v585 = vadd.f32 %v584, 0.0036580483
        %v586 = vmul.f32 %v581, %v585
        %v587 = vadd.f32 %v586, 0.05243302
        %v588 = vmul.f32 %v581, %v587
        %v589 = vadd.f32 %v588, 0.18741608
        %v590 = vmul.f32 %v581, %v589
        %v591 = vadd.f32 %v590, 1.1283791
        %v592 = vmul.f32 %v579, %v591
        %v593 = vmul.f32 %v581, 3.8918573e-05
        %v594 = vadd.f32 %v593, 0.001143296
        %v595 = vmul.f32 %v581, %v594
        %v596 = vadd.f32 %v595, 0.014752088
        %v597 = vmul.f32 %v581, %v596
        %v598 = vadd.f32 %v597, 0.112945676
        %v599 = vmul.f32 %v581, %v598
        %v600 = vadd.f32 %v599, 0.4994258
        %v601 = vmul.f32 %v581, %v600
        %v602 = vadd.f32 %v601, 1.0
        %v603 = vrcp.pop %v602
        %v604 = vmul.f32 %v602, %v603
        %v605 = vsub.f32 1.0, %v604
        %v606 = vmul.f32 %v603, %v605
        %v607 = vadd.f32 %v603, %v606
        %vm608 = vweird.f32 %v602
        %vm609 = vweird.f32 %v603
        %vm610 = vmor %vm608, %vm609
        %v611 = vsel %vm610, %v603, %v607
        %v612 = vand.u32 2147483647, %v602
        %vm613 = vcmp.eq.f32.partialorder %v612, 8.507059e+37
        %v614 = vand.u32 %v602, 2147483648
        %v615 = vor.u32 1.1754944e-38, %v614
        %v616 = vsel %vm613, %v615, %v611
        %v617 = vmul.f32 %v592, %v616
        %v618 = vmin.f32 %v617, 1.0
        %v619 = vmax.f32 %v618, -1.0
        %v620 = vadd.f32 %v619, 1.0
        %v621 = vmul.f32 %v578, %v620
        %622 = vst [vmem:[%s377] sm:$0xff] %v621
        %s623 = sand.u32 %s269, 1
        %s624 = scalar_lea.sflag [#allocation3], %s623
        %s625 = sand.u32 %s269, 1
        %s626 = smul.addr %s625, 8
        %s627 = scalar_lea.vmem [#allocation2], %s626
        // Predicated region
        $region65: #{embed_forward.1} parent=63 // pred_check
          %p628 = pneg %p279
        $region66: #{embed_forward.1} parent=63 // pred_check_branch
          %630 = sbr.rel (%p628) target = $region68
        $region67: #{embed_forward.1} parent=63 // pred_region
          %632 = vsyncadd %s624, 0
          %s633 = smul.addr %s25, 8
          %s634 = scalar_lea.hbm %s11, %s633
          %s636 = sshll.u32 %s627, 4
          %s637 = int_to_ptr.vmem [resolvable:$true] %s636
          %s638 = sshll.u32 %s634, 4
          %s639 = int_to_ptr.hbm [resolvable:$true] %s638
          %641 = dma.vmem_to_hbm [thread:$0]  %s637, 128, %s639, %s624
        $region68: #{embed_forward.1} parent=63 // pred_fallthru
          _
      $region64: #{embed_forward.1} parent=5 // pred_fallthru
        _
      %p642 = scmp.le.s32.totalorder 2, %s20
      // Predicated region
      $region69: #{embed_forward.1} parent=5 // pred_check
        %p643 = pneg %p642
      $region70: #{embed_forward.1} parent=5 // pred_check_branch
        %645 = sbr.rel (%p643) target = $region72
      $region71: #{embed_forward.1} parent=5 // pred_region
        %s646 = ssub.s32 %s20, 2
        // Predicated region
        $region73: #{embed_forward.1} parent=71 // pred_check
          %p647 = pneg %p285
        $region74: #{embed_forward.1} parent=71 // pred_check_branch
          %649 = sbr.rel (%p647) target = $region76
        $region75: #{embed_forward.1} parent=71 // pred_region
          %s650 = sand.u32 %s270, 1
          %s651 = scalar_lea.sflag [#allocation3], %s650
          %s652 = sand.u32 %s270, 1
          %s653 = smul.addr %s652, 8
          %s654 = scalar_lea.vmem [#allocation2], %s653
          %656 = dma.done %s651, 128
        $region76: #{embed_forward.1} parent=71 // pred_fallthru
          _
      $region72: #{embed_forward.1} parent=5 // pred_fallthru
        _
    $region6: #{embed_forward.1} parent=1 // loop_footer
      %s24 = sadd.s32 1, %s20
    $region7: #{embed_forward.1} parent=1 // loop_footer_branch
      %19 = sbr.rel target = $region3
    $region8: #{embed_forward.1} parent=1 // loop_exit
      _
    %657 = vsyncpa [#allocation3], 1
    %s658 = scalar_lea.sflag [#allocation3], 1
    %659 = vsyncpa %s658, 1

</llo_original>
